<compile_context>
chip_gen: v6e
topology: v6e:2x2x1
jax: 0.10.0
libtpu: 0.0.40
codegen_flags: <defaults>
</compile_context>

<pallas_src>
import functools

import jax
import jax.numpy as jnp
from jax import lax
from jax.experimental import pallas as pl
from jax.experimental.pallas import tpu as pltpu


def _round_up(x, m):
    return (x + m - 1) // m * m


def _vmem_capacity_bytes():
    """Physical VMEM per TensorCore (64 MiB on v7x, 128 MiB on v5e/v6e)."""
    try:
        return int(pltpu.get_tpu_info().vmem_capacity_bytes)
    except Exception:  # pragma: no cover - conservative default (v7x)
        return 64 * 1024 * 1024


def _vmem_need(blk, d, n_exp, b, topk, x_isz, w_isz):
    """Conservative VMEM bytes for one pipelined configuration."""
    return (2 * blk * d * x_isz           # double-buffered x tiles
            + 2 * d * n_exp * w_isz       # router weight (budget 2 buffers even
                                          #   though we request Buffered(1))
            + 2 * blk * 4                 # double-buffered bid tiles (int32)
            + 2 * 2 * topk * blk * 4      # double-buffered weight+idx out tiles
            + 2 * 2 * b * n_exp * 4       # double-buffered pi/cnt partial tiles
            + 8 * blk * n_exp * 4)        # logits / score / top-k temporaries


def _choose_token_block(d, n_exp, b, topk, x_isz, w_isz, *,
                        max_block, budget_bytes):
    """Largest power-of-two token tile (>=128) that fits the VMEM budget."""
    blk = max_block
    while blk > 128 and _vmem_need(blk, d, n_exp, b, topk, x_isz, w_isz) > budget_bytes:
        blk //= 2
    return blk


def _gate_kernel(x_ref, w_ref, bid_ref, weight_ref, idx_ref, pi_ref, cnt_ref, *,
                 topk, score_func, route_scale, transposed_out):
    tb = x_ref.shape[0]
    n_exp = w_ref.shape[1]
    n_batch = pi_ref.shape[1]

    # ---- router logits / scores (MXU, f32 accumulate) ----------------------
    logits = jnp.dot(x_ref[...], w_ref[...],
                     preferred_element_type=jnp.float32)          # (TB, E)

    if score_func == "softmax":
        m = jnp.max(logits, axis=-1, keepdims=True)
        e = jnp.exp(logits - m)
        # Exact divide: kernel is HBM-bound, so the VPU divide is free and
        # gives bit-closer parity with the torch reference.
        score = e / jnp.sum(e, axis=-1, keepdims=True)
    else:  # 'sigmoid'
        score = jax.nn.sigmoid(logits)

    # ---- iterative top-k (k is tiny; one max + one min reduce per step) ----
    lane_iota = lax.broadcasted_iota(jnp.int32, (tb, n_exp), 1)
    neg = jnp.finfo(jnp.float32).min

    masked = score
    sel = jnp.zeros((tb, n_exp), jnp.float32)      # top-k indicator (for counts)
    w_cols, i_cols = [], []
    for _ in range(topk):
        mx = jnp.max(masked, axis=-1, keepdims=True)                  # (TB, 1)
        is_max = masked == mx
        am = jnp.min(jnp.where(is_max, lane_iota, n_exp), axis=-1,
                     keepdims=True)                                   # (TB, 1)
        hit = lane_iota == am
        w_cols.append(mx)
        i_cols.append(am)
        sel = sel + hit.astype(jnp.float32)
        masked = jnp.where(hit, neg, masked)

    wts = jnp.concatenate(w_cols, axis=-1)          # (TB, topk)
    ids = jnp.concatenate(i_cols, axis=-1)          # (TB, topk) int32

    if score_func == "sigmoid":
        wts = wts / jnp.sum(wts, axis=-1, keepdims=True)
    wts = wts * route_scale

    if transposed_out:
        # Lane-dense stores: token axis on lanes.  The (TB, topk) -> (topk, TB)
        # transpose is XLU work (otherwise idle here) and removes topk-wide
        # masked partial stores from the store path.
        weight_ref[...] = jnp.transpose(wts).astype(weight_ref.dtype)
        idx_ref[...] = jnp.transpose(ids).astype(idx_ref.dtype)
    else:
        weight_ref[...] = wts.astype(weight_ref.dtype)
        idx_ref[...] = ids.astype(idx_ref.dtype)

    # ---- fused aux-loss partials: per-tile (B, E) sums via tiny matmuls ----
    bid_row = bid_ref[0]                                              # (1, TB)
    onehot_bt = (lax.broadcasted_iota(jnp.int32, (n_batch, tb), 0)
                 == bid_row).astype(jnp.float32)                      # (B, TB)
    # Padded tokens carry batch id -1 and never match -> masked out.
    pi_ref[0] = jnp.dot(onehot_bt, score,
                        preferred_element_type=jnp.float32)           # (B, E)
    cnt_ref[0] = jnp.dot(onehot_bt, sel,
                         preferred_element_type=jnp.float32)          # (B, E)


def _build_gate_call(*, t_pad, token_block, d, n_exp, b, topk, num_tiles,
                     score_func, route_scale, vmem_limit, fast):
    kern = functools.partial(_gate_kernel, topk=topk, score_func=score_func,
                             route_scale=route_scale, transposed_out=fast)

    if fast:
        # Resident (D, E) weight: constant index_map -> fetched once; single-
        # buffer it so its second buffer's VMEM returns to the token tile.
        w_spec = pl.BlockSpec((d, n_exp), lambda i: (0, 0),
                              pipeline_mode=pl.Buffered(buffer_count=1))
        # Lane-dense outputs: (topk, token_block) blocks, token axis on lanes.
        weight_shape = jax.ShapeDtypeStruct((topk, t_pad), jnp.float32)
        idx_shape = jax.ShapeDtypeStruct((topk, t_pad), jnp.int32)
        weight_spec = pl.BlockSpec((topk, token_block), lambda i: (0, i))
        idx_spec = pl.BlockSpec((topk, token_block), lambda i: (0, i))
    else:
        # Conservative fallback: plain (token_block, topk) blocks, default
        # double-buffered weight (this configuration is known-good).
        w_spec = pl.BlockSpec((d, n_exp), lambda i: (0, 0))
        weight_shape = jax.ShapeDtypeStruct((t_pad, topk), jnp.float32)
        idx_shape = jax.ShapeDtypeStruct((t_pad, topk), jnp.int32)
        weight_spec = pl.BlockSpec((token_block, topk), lambda i: (i, 0))
        idx_spec = pl.BlockSpec((token_block, topk), lambda i: (i, 0))

    return pl.pallas_call(
        kern,
        out_shape=(
            weight_shape,
            idx_shape,
            jax.ShapeDtypeStruct((num_tiles, b, n_exp), jnp.float32),
            jax.ShapeDtypeStruct((num_tiles, b, n_exp), jnp.float32),
        ),
        grid_spec=pltpu.PrefetchScalarGridSpec(
            num_scalar_prefetch=0,
            grid=(num_tiles,),
            in_specs=[
                pl.BlockSpec((token_block, d), lambda i: (i, 0)),
                w_spec,
                pl.BlockSpec((1, 1, token_block), lambda i: (i, 0, 0)),
            ],
            out_specs=[
                weight_spec,
                idx_spec,
                pl.BlockSpec((1, b, n_exp), lambda i: (i, 0, 0)),
                pl.BlockSpec((1, b, n_exp), lambda i: (i, 0, 0)),
            ],
        ),
        compiler_params=pltpu.CompilerParams(
            # Token axis is fully parallel (aux partials are per-tile; no carry).
            # TODO(synk): on v7x verify both TensorCores are active; if one
            # idles, switch this axis to pltpu.CORE_PARALLEL.
            dimension_semantics=("parallel",),
            vmem_limit_bytes=vmem_limit,
        ),
    )


def gate_forward(x, w_t, *, topk=2, route_scale=1.0, alpha=0.1,
                 score_func="softmax", training=True, token_block=None):
    """MoE router (Gate.forward).

    x   : (B, N, D) activations.  Keep bf16 upstream when possible — the kernel
          is x-HBM-bandwidth bound and streams x in its native dtype.
    w_t : (D, E) router weight, i.e. nn.Linear(D, E).weight transposed ONCE at
          parameter-init time (removes the per-forward HBM transpose).
    Returns (weight (T, topk) f32, idx (T, topk) int32, aux_loss scalar).
    Note: idx is int32 (torch.topk returns int64); cast downstream if needed.
    """
    b, n, d = x.shape
    d2, n_exp = w_t.shape
    assert d2 == d, "w_t must be the (D, E) pre-transposed router weight"
    assert topk <= n_exp, "topk must not exceed the number of routed experts"
    t = b * n

    xf = x.reshape(t, d)                    # keep input dtype (bf16 stays bf16)

    x_isz = jnp.dtype(xf.dtype).itemsize
    w_isz = jnp.dtype(w_t.dtype).itemsize

    capacity = _vmem_capacity_bytes()
    budget = int(capacity * 0.70)           # ~45 MiB on v7x, ~90 MiB on v5e/v6e
    max_block = 2048 if capacity >= 100 * 2 ** 20 else 1024

    if token_block is None:
        token_block = _choose_token_block(d, n_exp, b, topk, x_isz, w_isz,
                                          max_block=max_block,
                                          budget_bytes=budget)
    else:
        token_block = max(8, _round_up(int(token_block), 8))
    if t <= token_block:
        token_block = _round_up(t, 8)       # single tile: blocks == array dims
    else:
        token_block = _round_up(token_block, 128)   # lane-dense out blocks

    t_pad = _round_up(t, token_block)
    if t_pad != t:
        xf = jnp.pad(xf, ((0, t_pad - t), (0, 0)))
    num_tiles = t_pad // token_block

    # Batch id per (padded) token; -1 marks padding so it never hits a batch row.
    tok = jnp.arange(t_pad, dtype=jnp.int32)
    bid = jnp.where(tok < t, tok // n, -1).reshape(num_tiles, 1, token_block)

    need = _vmem_need(token_block, d, n_exp, b, topk, x_isz, w_isz)
    vmem_limit = int(min(int(capacity * 0.75),            # leave Mosaic headroom
                         max(16 * 2 ** 20, int(1.5 * need))))

    common = dict(t_pad=t_pad, token_block=token_block, d=d, n_exp=n_exp, b=b,
                  topk=topk, num_tiles=num_tiles, score_func=score_func,
                  route_scale=route_scale, vmem_limit=vmem_limit)

    try:
        weight_t, idx_t, pi_part, cnt_part = _build_gate_call(
            **common, fast=True)(xf, w_t, bid)
        # Tiny (topk, T) -> (T, topk) transpose outside the hot store path.
        weight = jnp.transpose(weight_t)[:t]
        idx = jnp.transpose(idx_t)[:t]
    except Exception:
        # Fallback config (known-good): plain (T, topk) stores, default
        # double-buffered weight.  Same values, only pipelining/layout differ.
        weight, idx, pi_part, cnt_part = _build_gate_call(
            **common, fast=False)(xf, w_t, bid)
        weight = weight[:t]
        idx = idx[:t]

    # Tiny final reductions over (num_tiles, B, E) partials.
    if training and alpha > 0.0:
        pi = pi_part.sum(axis=0) / n                      # (B, E) mean score
        counts = cnt_part.sum(axis=0)                     # (B, E) routing counts
        fi = counts / (topk * n / n_exp)
        aux_loss = (fi * pi).sum(axis=1).mean() * alpha
    else:
        aux_loss = 0.0

    return weight, idx, aux_loss


def _gate_ref(x, w, *, topk=2, route_scale=1.0, alpha=0.1, training=True):
    """Pure-JAX reference matching the torch module (softmax path)."""
    b, n, d = x.shape
    n_exp = w.shape[0]
    score = jax.nn.softmax(x.reshape(-1, d).astype(jnp.float32) @ w.T, axis=-1)
    weight, idx = lax.top_k(score, topk)
    if training and alpha > 0.0:
        one_hot = jax.nn.one_hot(idx.reshape(b, n * topk), n_exp,
                                 dtype=jnp.float32)
        fi = one_hot.sum(axis=1) / (topk * n / n_exp)
        pi = score.reshape(b, n, n_exp).mean(axis=1)
        aux = (fi * pi).sum(axis=1).mean() * alpha
    else:
        aux = 0.0
    return weight * route_scale, idx, aux


if __name__ == "__main__":
    B, N, DIM, TOPK, N_EXP = 2, 8, 32, 2, 4
    key = jax.random.PRNGKey(0)
    kx, kw = jax.random.split(key)
    x = jax.random.normal(kx, (B, N, DIM), dtype=jnp.float32)
    # nn.Linear(dim, n_route_expert, bias=False).weight layout: (E, D).
    w = jax.random.normal(kw, (N_EXP, DIM), dtype=jnp.float32) * (1.0 / DIM ** 0.5)
    # One-time parameter-layout transform (NOT in the per-forward hot path).
    w_t = jnp.transpose(w)                                 # (D, E)

    weight, idx, aux_loss = gate_forward(
        x, w_t, topk=TOPK, route_scale=1.0, alpha=0.1,
        score_func="softmax", training=True)
    jax.block_until_ready((weight, idx, aux_loss))

    w_ref, i_ref, aux_ref = _gate_ref(x, w, topk=TOPK, route_scale=1.0,
                                      alpha=0.1, training=True)
    assert jnp.allclose(weight, w_ref, atol=2e-3, rtol=2e-3), \
        "routing weights mismatch"
    assert jnp.array_equal(idx, i_ref.astype(jnp.int32)), "expert indices mismatch"
    assert jnp.allclose(jnp.asarray(aux_loss), jnp.asarray(aux_ref),
                        atol=1e-3, rtol=1e-3), "aux loss mismatch"

    print("KERNEL_OK")
</pallas_src>

<mosaic_0001>
module attributes {stable_mosaic.version = 11 : i64} {
  func.func @_gate_kernel(%arg0: i32, %arg1: memref<16x32xf32, #tpu.memory_space<vmem>>, %arg2: memref<32x4xf32, #tpu.memory_space<vmem>>, %arg3: memref<1x1x16xi32, #tpu.memory_space<vmem>>, %arg4: memref<2x16xf32, #tpu.memory_space<vmem>>, %arg5: memref<2x16xi32, #tpu.memory_space<vmem>>, %arg6: memref<1x2x4xf32, #tpu.memory_space<vmem>>, %arg7: memref<1x2x4xf32, #tpu.memory_space<vmem>>) attributes {dimension_semantics = [#tpu.dimension_semantics<parallel>], iteration_bounds = array<i64: 1>, scalar_prefetch = 0 : i64, scratch_operands = 0 : i64, tpu.core_type = #tpu.core_type<tc>, window_params = [{transform_indices = @transform_0, window_bounds = array<i64: 16, 32>}, {pipeline_mode = #tpu.pipeline_mode<synchronous>, transform_indices = @transform_1, window_bounds = array<i64: 32, 4>}, {transform_indices = @transform_2, window_bounds = array<i64: 1, 1, 16>}, {transform_indices = @transform_3, window_bounds = array<i64: 2, 16>}, {transform_indices = @transform_4, window_bounds = array<i64: 2, 16>}, {transform_indices = @transform_5, window_bounds = array<i64: 1, 2, 4>}, {transform_indices = @transform_6, window_bounds = array<i64: 1, 2, 4>}]} {
    %c0 = arith.constant 0 : index
    %c0_0 = arith.constant 0 : index
    %0 = vector.load %arg1[%c0, %c0_0] : memref<16x32xf32, #tpu.memory_space<vmem>>, vector<16x32xf32>
    %c0_1 = arith.constant 0 : index
    %c0_2 = arith.constant 0 : index
    %1 = vector.load %arg2[%c0_1, %c0_2] : memref<32x4xf32, #tpu.memory_space<vmem>>, vector<32x4xf32>
    %cst = arith.constant dense<0.000000e+00> : vector<16x4xf32>
    %2 = tpu.matmul %0, %1, %cst {dimension_numbers = #tpu.dot_dimension_numbers<[1], [0], [0], [1], [0, 0, 1, 1], [], []>} : vector<16x32xf32>, vector<32x4xf32>, vector<16x4xf32> -> vector<16x4xf32>
    %cst_3 = arith.constant dense<0xFF800000> : vector<16xf32>
    %3 = vector.multi_reduction <maximumf>, %2, %cst_3 [1] : vector<16x4xf32> to vector<16xf32>
    %4 = vector.shape_cast %3 : vector<16xf32> to vector<16x1xf32>
    %5 = vector.broadcast %4 : vector<16x1xf32> to vector<16x4xf32>
    %6 = arith.subf %2, %5 : vector<16x4xf32>
    %7 = math.exp %6 : vector<16x4xf32>
    %cst_4 = arith.constant dense<0.000000e+00> : vector<16xf32>
    %8 = vector.multi_reduction <add>, %7, %cst_4 [1] : vector<16x4xf32> to vector<16xf32>
    %9 = vector.shape_cast %8 : vector<16xf32> to vector<16x1xf32>
    %10 = vector.broadcast %9 : vector<16x1xf32> to vector<16x4xf32>
    %11 = arith.divf %7, %10 : vector<16x4xf32>
    %12 = tpu.iota {dimensions = array<i32: 1>} : vector<16x4xi32>
    %cst_5 = arith.constant 0.000000e+00 : f32
    %13 = vector.broadcast %cst_5 : f32 to vector<16x4xf32>
    %cst_6 = arith.constant dense<0xFF800000> : vector<16xf32>
    %14 = vector.multi_reduction <maximumf>, %11, %cst_6 [1] : vector<16x4xf32> to vector<16xf32>
    %15 = vector.shape_cast %14 : vector<16xf32> to vector<16x1xf32>
    %16 = vector.broadcast %15 : vector<16x1xf32> to vector<16x4xf32>
    %17 = arith.cmpf oeq, %11, %16 : vector<16x4xf32>
    %c4_i32 = arith.constant 4 : i32
    %18 = vector.broadcast %c4_i32 : i32 to vector<16x4xi32>
    %19 = arith.select %17, %12, %18 : vector<16x4xi1>, vector<16x4xi32>
    %cst_7 = arith.constant dense<2147483647> : vector<16xi32>
    %20 = vector.multi_reduction <minsi>, %19, %cst_7 [1] : vector<16x4xi32> to vector<16xi32>
    %21 = vector.shape_cast %20 : vector<16xi32> to vector<16x1xi32>
    %22 = vector.broadcast %21 : vector<16x1xi32> to vector<16x4xi32>
    %23 = arith.cmpi eq, %12, %22 : vector<16x4xi32>
    %24 = arith.extui %23 : vector<16x4xi1> to vector<16x4xi32>
    %25 = arith.sitofp %24 : vector<16x4xi32> to vector<16x4xf32>
    %26 = arith.addf %13, %25 : vector<16x4xf32>
    %cst_8 = arith.constant -3.40282347E+38 : f32
    %27 = vector.broadcast %cst_8 : f32 to vector<16x4xf32>
    %28 = arith.select %23, %27, %11 : vector<16x4xi1>, vector<16x4xf32>
    %cst_9 = arith.constant dense<0xFF800000> : vector<16xf32>
    %29 = vector.multi_reduction <maximumf>, %28, %cst_9 [1] : vector<16x4xf32> to vector<16xf32>
    %30 = vector.shape_cast %29 : vector<16xf32> to vector<16x1xf32>
    %31 = vector.broadcast %30 : vector<16x1xf32> to vector<16x4xf32>
    %32 = arith.cmpf oeq, %28, %31 : vector<16x4xf32>
    %c4_i32_10 = arith.constant 4 : i32
    %33 = vector.broadcast %c4_i32_10 : i32 to vector<16x4xi32>
    %34 = arith.select %32, %12, %33 : vector<16x4xi1>, vector<16x4xi32>
    %cst_11 = arith.constant dense<2147483647> : vector<16xi32>
    %35 = vector.multi_reduction <minsi>, %34, %cst_11 [1] : vector<16x4xi32> to vector<16xi32>
    %36 = vector.shape_cast %35 : vector<16xi32> to vector<16x1xi32>
    %37 = vector.broadcast %36 : vector<16x1xi32> to vector<16x4xi32>
    %38 = arith.cmpi eq, %12, %37 : vector<16x4xi32>
    %39 = arith.extui %38 : vector<16x4xi1> to vector<16x4xi32>
    %40 = arith.sitofp %39 : vector<16x4xi32> to vector<16x4xf32>
    %41 = arith.addf %26, %40 : vector<16x4xf32>
    %42 = tpu.concatenate %15, %30 in 1 : vector<16x1xf32>, vector<16x1xf32> -> vector<16x2xf32>
    %43 = tpu.concatenate %21, %36 in 1 : vector<16x1xi32>, vector<16x1xi32> -> vector<16x2xi32>
    %cst_12 = arith.constant 1.000000e+00 : f32
    %44 = vector.broadcast %cst_12 : f32 to vector<16x2xf32>
    %45 = arith.mulf %42, %44 : vector<16x2xf32>
    %46 = tpu.transpose %45, [1, 0] : vector<16x2xf32> -> vector<2x16xf32>
    %c0_13 = arith.constant 0 : index
    %c0_14 = arith.constant 0 : index
    %47 = vector.load %arg4[%c0_13, %c0_14] : memref<2x16xf32, #tpu.memory_space<vmem>>, vector<2x16xf32>
    tpu.vector_store %arg4[%c0_13, %c0_14], %46 {strides = array<i32>} : memref<2x16xf32, #tpu.memory_space<vmem>>, vector<2x16xf32>,
    %48 = tpu.transpose %43, [1, 0] : vector<16x2xi32> -> vector<2x16xi32>
    %c0_15 = arith.constant 0 : index
    %c0_16 = arith.constant 0 : index
    %49 = vector.load %arg5[%c0_15, %c0_16] : memref<2x16xi32, #tpu.memory_space<vmem>>, vector<2x16xi32>
    tpu.vector_store %arg5[%c0_15, %c0_16], %48 {strides = array<i32>} : memref<2x16xi32, #tpu.memory_space<vmem>>, vector<2x16xi32>,
    %c0_17 = arith.constant 0 : index
    %c0_18 = arith.constant 0 : index
    %c0_19 = arith.constant 0 : index
    %50 = vector.load %arg3[%c0_17, %c0_18, %c0_19] : memref<1x1x16xi32, #tpu.memory_space<vmem>>, vector<1x1x16xi32>
    %51 = vector.shape_cast %50 : vector<1x1x16xi32> to vector<1x16xi32>
    %52 = tpu.iota {dimensions = array<i32: 0>} : vector<2x16xi32>
    %53 = vector.broadcast %51 : vector<1x16xi32> to vector<2x16xi32>
    %54 = arith.cmpi eq, %52, %53 : vector<2x16xi32>
    %55 = arith.extui %54 : vector<2x16xi1> to vector<2x16xi32>
    %56 = arith.sitofp %55 : vector<2x16xi32> to vector<2x16xf32>
    %cst_20 = arith.constant dense<0.000000e+00> : vector<2x4xf32>
    %57 = tpu.matmul %56, %11, %cst_20 {dimension_numbers = #tpu.dot_dimension_numbers<[1], [0], [0], [1], [0, 0, 1, 1], [], []>} : vector<2x16xf32>, vector<16x4xf32>, vector<2x4xf32> -> vector<2x4xf32>
    %c0_21 = arith.constant 0 : index
    %c0_22 = arith.constant 0 : index
    %c0_23 = arith.constant 0 : index
    %58 = vector.load %arg6[%c0_21, %c0_22, %c0_23] : memref<1x2x4xf32, #tpu.memory_space<vmem>>, vector<1x2x4xf32>
    %59 = vector.shape_cast %58 : vector<1x2x4xf32> to vector<2x4xf32>
    %60 = vector.shape_cast %57 : vector<2x4xf32> to vector<1x2x4xf32>
    tpu.vector_store %arg6[%c0_21, %c0_22, %c0_23], %60 {strides = array<i32>} : memref<1x2x4xf32, #tpu.memory_space<vmem>>, vector<1x2x4xf32>,
    %cst_24 = arith.constant dense<0.000000e+00> : vector<2x4xf32>
    %61 = tpu.matmul %56, %41, %cst_24 {dimension_numbers = #tpu.dot_dimension_numbers<[1], [0], [0], [1], [0, 0, 1, 1], [], []>} : vector<2x16xf32>, vector<16x4xf32>, vector<2x4xf32> -> vector<2x4xf32>
    %c0_25 = arith.constant 0 : index
    %c0_26 = arith.constant 0 : index
    %c0_27 = arith.constant 0 : index
    %62 = vector.load %arg7[%c0_25, %c0_26, %c0_27] : memref<1x2x4xf32, #tpu.memory_space<vmem>>, vector<1x2x4xf32>
    %63 = vector.shape_cast %62 : vector<1x2x4xf32> to vector<2x4xf32>
    %64 = vector.shape_cast %61 : vector<2x4xf32> to vector<1x2x4xf32>
    tpu.vector_store %arg7[%c0_25, %c0_26, %c0_27], %64 {strides = array<i32>} : memref<1x2x4xf32, #tpu.memory_space<vmem>>, vector<1x2x4xf32>,
    return
  }
  func.func @transform_0(%arg0: i32) -> (i32, i32) {
    %c0_i32 = arith.constant 0 : i32
    %c0_i32_0 = arith.constant 0 : i32
    return %arg0, %c0_i32 : i32, i32
  }
  func.func @transform_1(%arg0: i32) -> (i32, i32) {
    %c0_i32 = arith.constant 0 : i32
    %c0_i32_0 = arith.constant 0 : i32
    %c0_i32_1 = arith.constant 0 : i32
    return %c0_i32, %c0_i32_0 : i32, i32
  }
  func.func @transform_2(%arg0: i32) -> (i32, i32, i32) {
    %c0_i32 = arith.constant 0 : i32
    %c0_i32_0 = arith.constant 0 : i32
    %c0_i32_1 = arith.constant 0 : i32
    return %arg0, %c0_i32, %c0_i32_0 : i32, i32, i32
  }
  func.func @transform_3(%arg0: i32) -> (i32, i32) {
    %c0_i32 = arith.constant 0 : i32
    %c0_i32_0 = arith.constant 0 : i32
    return %c0_i32, %arg0 : i32, i32
  }
  func.func @transform_4(%arg0: i32) -> (i32, i32) {
    %c0_i32 = arith.constant 0 : i32
    %c0_i32_0 = arith.constant 0 : i32
    return %c0_i32, %arg0 : i32, i32
  }
  func.func @transform_5(%arg0: i32) -> (i32, i32, i32) {
    %c0_i32 = arith.constant 0 : i32
    %c0_i32_0 = arith.constant 0 : i32
    %c0_i32_1 = arith.constant 0 : i32
    return %arg0, %c0_i32, %c0_i32_0 : i32, i32, i32
  }
  func.func @transform_6(%arg0: i32) -> (i32, i32, i32) {
    %c0_i32 = arith.constant 0 : i32
    %c0_i32_0 = arith.constant 0 : i32
    %c0_i32_1 = arith.constant 0 : i32
    return %arg0, %c0_i32, %c0_i32_0 : i32, i32, i32
  }
}

module attributes {stable_mosaic.version = 11 : i64} {
  func.func @_gate_kernel(%arg0: i32, %arg1: memref<16x32xf32, #tpu.memory_space<vmem>>, %arg2: memref<32x4xf32, #tpu.memory_space<vmem>>, %arg3: memref<1x1x16xi32, #tpu.memory_space<vmem>>, %arg4: memref<16x2xf32, #tpu.memory_space<vmem>>, %arg5: memref<16x2xi32, #tpu.memory_space<vmem>>, %arg6: memref<1x2x4xf32, #tpu.memory_space<vmem>>, %arg7: memref<1x2x4xf32, #tpu.memory_space<vmem>>) attributes {dimension_semantics = [#tpu.dimension_semantics<parallel>], iteration_bounds = array<i64: 1>, scalar_prefetch = 0 : i64, scratch_operands = 0 : i64, tpu.core_type = #tpu.core_type<tc>, window_params = [{transform_indices = @transform_0, window_bounds = array<i64: 16, 32>}, {pipeline_mode = #tpu.pipeline_mode<synchronous>, transform_indices = @transform_1, window_bounds = array<i64: 32, 4>}, {transform_indices = @transform_2, window_bounds = array<i64: 1, 1, 16>}, {transform_indices = @transform_3, window_bounds = array<i64: 16, 2>}, {transform_indices = @transform_4, window_bounds = array<i64: 16, 2>}, {transform_indices = @transform_5, window_bounds = array<i64: 1, 2, 4>}, {transform_indices = @transform_6, window_bounds = array<i64: 1, 2, 4>}]} {
    %c0 = arith.constant 0 : index
    %c0_0 = arith.constant 0 : index
    %0 = vector.load %arg1[%c0, %c0_0] : memref<16x32xf32, #tpu.memory_space<vmem>>, vector<16x32xf32>
    %c0_1 = arith.constant 0 : index
    %c0_2 = arith.constant 0 : index
    %1 = vector.load %arg2[%c0_1, %c0_2] : memref<32x4xf32, #tpu.memory_space<vmem>>, vector<32x4xf32>
    %cst = arith.constant dense<0.000000e+00> : vector<16x4xf32>
    %2 = tpu.matmul %0, %1, %cst {dimension_numbers = #tpu.dot_dimension_numbers<[1], [0], [0], [1], [0, 0, 1, 1], [], []>} : vector<16x32xf32>, vector<32x4xf32>, vector<16x4xf32> -> vector<16x4xf32>
    %cst_3 = arith.constant dense<0xFF800000> : vector<16xf32>
    %3 = vector.multi_reduction <maximumf>, %2, %cst_3 [1] : vector<16x4xf32> to vector<16xf32>
    %4 = vector.shape_cast %3 : vector<16xf32> to vector<16x1xf32>
    %5 = vector.broadcast %4 : vector<16x1xf32> to vector<16x4xf32>
    %6 = arith.subf %2, %5 : vector<16x4xf32>
    %7 = math.exp %6 : vector<16x4xf32>
    %cst_4 = arith.constant dense<0.000000e+00> : vector<16xf32>
    %8 = vector.multi_reduction <add>, %7, %cst_4 [1] : vector<16x4xf32> to vector<16xf32>
    %9 = vector.shape_cast %8 : vector<16xf32> to vector<16x1xf32>
    %10 = vector.broadcast %9 : vector<16x1xf32> to vector<16x4xf32>
    %11 = arith.divf %7, %10 : vector<16x4xf32>
    %12 = tpu.iota {dimensions = array<i32: 1>} : vector<16x4xi32>
    %cst_5 = arith.constant 0.000000e+00 : f32
    %13 = vector.broadcast %cst_5 : f32 to vector<16x4xf32>
    %cst_6 = arith.constant dense<0xFF800000> : vector<16xf32>
    %14 = vector.multi_reduction <maximumf>, %11, %cst_6 [1] : vector<16x4xf32> to vector<16xf32>
    %15 = vector.shape_cast %14 : vector<16xf32> to vector<16x1xf32>
    %16 = vector.broadcast %15 : vector<16x1xf32> to vector<16x4xf32>
    %17 = arith.cmpf oeq, %11, %16 : vector<16x4xf32>
    %c4_i32 = arith.constant 4 : i32
    %18 = vector.broadcast %c4_i32 : i32 to vector<16x4xi32>
    %19 = arith.select %17, %12, %18 : vector<16x4xi1>, vector<16x4xi32>
    %cst_7 = arith.constant dense<2147483647> : vector<16xi32>
    %20 = vector.multi_reduction <minsi>, %19, %cst_7 [1] : vector<16x4xi32> to vector<16xi32>
    %21 = vector.shape_cast %20 : vector<16xi32> to vector<16x1xi32>
    %22 = vector.broadcast %21 : vector<16x1xi32> to vector<16x4xi32>
    %23 = arith.cmpi eq, %12, %22 : vector<16x4xi32>
    %24 = arith.extui %23 : vector<16x4xi1> to vector<16x4xi32>
    %25 = arith.sitofp %24 : vector<16x4xi32> to vector<16x4xf32>
    %26 = arith.addf %13, %25 : vector<16x4xf32>
    %cst_8 = arith.constant -3.40282347E+38 : f32
    %27 = vector.broadcast %cst_8 : f32 to vector<16x4xf32>
    %28 = arith.select %23, %27, %11 : vector<16x4xi1>, vector<16x4xf32>
    %cst_9 = arith.constant dense<0xFF800000> : vector<16xf32>
    %29 = vector.multi_reduction <maximumf>, %28, %cst_9 [1] : vector<16x4xf32> to vector<16xf32>
    %30 = vector.shape_cast %29 : vector<16xf32> to vector<16x1xf32>
    %31 = vector.broadcast %30 : vector<16x1xf32> to vector<16x4xf32>
    %32 = arith.cmpf oeq, %28, %31 : vector<16x4xf32>
    %c4_i32_10 = arith.constant 4 : i32
    %33 = vector.broadcast %c4_i32_10 : i32 to vector<16x4xi32>
    %34 = arith.select %32, %12, %33 : vector<16x4xi1>, vector<16x4xi32>
    %cst_11 = arith.constant dense<2147483647> : vector<16xi32>
    %35 = vector.multi_reduction <minsi>, %34, %cst_11 [1] : vector<16x4xi32> to vector<16xi32>
    %36 = vector.shape_cast %35 : vector<16xi32> to vector<16x1xi32>
    %37 = vector.broadcast %36 : vector<16x1xi32> to vector<16x4xi32>
    %38 = arith.cmpi eq, %12, %37 : vector<16x4xi32>
    %39 = arith.extui %38 : vector<16x4xi1> to vector<16x4xi32>
    %40 = arith.sitofp %39 : vector<16x4xi32> to vector<16x4xf32>
    %41 = arith.addf %26, %40 : vector<16x4xf32>
    %42 = tpu.concatenate %15, %30 in 1 : vector<16x1xf32>, vector<16x1xf32> -> vector<16x2xf32>
    %43 = tpu.concatenate %21, %36 in 1 : vector<16x1xi32>, vector<16x1xi32> -> vector<16x2xi32>
    %cst_12 = arith.constant 1.000000e+00 : f32
    %44 = vector.broadcast %cst_12 : f32 to vector<16x2xf32>
    %45 = arith.mulf %42, %44 : vector<16x2xf32>
    %c0_13 = arith.constant 0 : index
    %c0_14 = arith.constant 0 : index
    %46 = vector.load %arg4[%c0_13, %c0_14] : memref<16x2xf32, #tpu.memory_space<vmem>>, vector<16x2xf32>
    tpu.vector_store %arg4[%c0_13, %c0_14], %45 {strides = array<i32>} : memref<16x2xf32, #tpu.memory_space<vmem>>, vector<16x2xf32>,
    %c0_15 = arith.constant 0 : index
    %c0_16 = arith.constant 0 : index
    %47 = vector.load %arg5[%c0_15, %c0_16] : memref<16x2xi32, #tpu.memory_space<vmem>>, vector<16x2xi32>
    tpu.vector_store %arg5[%c0_15, %c0_16], %43 {strides = array<i32>} : memref<16x2xi32, #tpu.memory_space<vmem>>, vector<16x2xi32>,
    %c0_17 = arith.constant 0 : index
    %c0_18 = arith.constant 0 : index
    %c0_19 = arith.constant 0 : index
    %48 = vector.load %arg3[%c0_17, %c0_18, %c0_19] : memref<1x1x16xi32, #tpu.memory_space<vmem>>, vector<1x1x16xi32>
    %49 = vector.shape_cast %48 : vector<1x1x16xi32> to vector<1x16xi32>
    %50 = tpu.iota {dimensions = array<i32: 0>} : vector<2x16xi32>
    %51 = vector.broadcast %49 : vector<1x16xi32> to vector<2x16xi32>
    %52 = arith.cmpi eq, %50, %51 : vector<2x16xi32>
    %53 = arith.extui %52 : vector<2x16xi1> to vector<2x16xi32>
    %54 = arith.sitofp %53 : vector<2x16xi32> to vector<2x16xf32>
    %cst_20 = arith.constant dense<0.000000e+00> : vector<2x4xf32>
    %55 = tpu.matmul %54, %11, %cst_20 {dimension_numbers = #tpu.dot_dimension_numbers<[1], [0], [0], [1], [0, 0, 1, 1], [], []>} : vector<2x16xf32>, vector<16x4xf32>, vector<2x4xf32> -> vector<2x4xf32>
    %c0_21 = arith.constant 0 : index
    %c0_22 = arith.constant 0 : index
    %c0_23 = arith.constant 0 : index
    %56 = vector.load %arg6[%c0_21, %c0_22, %c0_23] : memref<1x2x4xf32, #tpu.memory_space<vmem>>, vector<1x2x4xf32>
    %57 = vector.shape_cast %56 : vector<1x2x4xf32> to vector<2x4xf32>
    %58 = vector.shape_cast %55 : vector<2x4xf32> to vector<1x2x4xf32>
    tpu.vector_store %arg6[%c0_21, %c0_22, %c0_23], %58 {strides = array<i32>} : memref<1x2x4xf32, #tpu.memory_space<vmem>>, vector<1x2x4xf32>,
    %cst_24 = arith.constant dense<0.000000e+00> : vector<2x4xf32>
    %59 = tpu.matmul %54, %41, %cst_24 {dimension_numbers = #tpu.dot_dimension_numbers<[1], [0], [0], [1], [0, 0, 1, 1], [], []>} : vector<2x16xf32>, vector<16x4xf32>, vector<2x4xf32> -> vector<2x4xf32>
    %c0_25 = arith.constant 0 : index
    %c0_26 = arith.constant 0 : index
    %c0_27 = arith.constant 0 : index
    %60 = vector.load %arg7[%c0_25, %c0_26, %c0_27] : memref<1x2x4xf32, #tpu.memory_space<vmem>>, vector<1x2x4xf32>
    %61 = vector.shape_cast %60 : vector<1x2x4xf32> to vector<2x4xf32>
    %62 = vector.shape_cast %59 : vector<2x4xf32> to vector<1x2x4xf32>
    tpu.vector_store %arg7[%c0_25, %c0_26, %c0_27], %62 {strides = array<i32>} : memref<1x2x4xf32, #tpu.memory_space<vmem>>, vector<1x2x4xf32>,
    return
  }
  func.func @transform_0(%arg0: i32) -> (i32, i32) {
    %c0_i32 = arith.constant 0 : i32
    %c0_i32_0 = arith.constant 0 : i32
    return %arg0, %c0_i32 : i32, i32
  }
  func.func @transform_1(%arg0: i32) -> (i32, i32) {
    %c0_i32 = arith.constant 0 : i32
    %c0_i32_0 = arith.constant 0 : i32
    %c0_i32_1 = arith.constant 0 : i32
    return %c0_i32, %c0_i32_0 : i32, i32
  }
  func.func @transform_2(%arg0: i32) -> (i32, i32, i32) {
    %c0_i32 = arith.constant 0 : i32
    %c0_i32_0 = arith.constant 0 : i32
    %c0_i32_1 = arith.constant 0 : i32
    return %arg0, %c0_i32, %c0_i32_0 : i32, i32, i32
  }
  func.func @transform_3(%arg0: i32) -> (i32, i32) {
    %c0_i32 = arith.constant 0 : i32
    %c0_i32_0 = arith.constant 0 : i32
    return %arg0, %c0_i32 : i32, i32
  }
  func.func @transform_4(%arg0: i32) -> (i32, i32) {
    %c0_i32 = arith.constant 0 : i32
    %c0_i32_0 = arith.constant 0 : i32
    return %arg0, %c0_i32 : i32, i32
  }
  func.func @transform_5(%arg0: i32) -> (i32, i32, i32) {
    %c0_i32 = arith.constant 0 : i32
    %c0_i32_0 = arith.constant 0 : i32
    %c0_i32_1 = arith.constant 0 : i32
    return %arg0, %c0_i32, %c0_i32_0 : i32, i32, i32
  }
  func.func @transform_6(%arg0: i32) -> (i32, i32, i32) {
    %c0_i32 = arith.constant 0 : i32
    %c0_i32_0 = arith.constant 0 : i32
    %c0_i32_1 = arith.constant 0 : i32
    return %arg0, %c0_i32, %c0_i32_0 : i32, i32, i32
  }
}

</mosaic_0001>

<llo_original>
// kernel: tpu_custom_call.1
$region0: #{tpu_custom_call.1}
  #allocation0 [shape = 'u32[]', space=smem, size = 0x4, offset = 0x4, fixed_abs, tag = 'smem constant byte address 0x4 - core index']
  #allocation1 [shape = 'u32[144,128]{1,0:T(1,128)}', space=vmem, size = 0x12000, scoped, tag = 'internal scratch']
  %s0 = inlined_call_operand.vmem [shape: f32[16,32], index: 0, kind: input, shape index: {}]
  %s1 = inlined_call_operand.vmem [shape: f32[32,4], index: 1, kind: input, shape index: {}]
  %s2 = inlined_call_operand.vmem [shape: s32[1,1,16], index: 2, kind: input, shape index: {}]
  %s3 = inlined_call_operand.hbm [shape: f32[2,16], index: 3, kind: output, shape index: {0}]
  %s4 = inlined_call_operand.hbm [shape: s32[2,16], index: 4, kind: output, shape index: {1}]
  %s5 = inlined_call_operand.hbm [shape: f32[1,2,4], index: 5, kind: output, shape index: {2}]
  %s6 = inlined_call_operand.hbm [shape: f32[1,2,4], index: 6, kind: output, shape index: {3}]
  %7 = xla_tuple %s3, %s4, %s5, %s6
  %s8 = sld [smem:[#allocation0]]
  $region46: #{tpu_custom_call.1} parent=0
    _
  %s10 = ssub.s32 1, %s8
  %s11 = scalar_select 0, %s10, %s8
  $region1: #{tpu_custom_call.1} parent=0
    #allocation2 [shape = 'u8[1024]{0}', space=vmem, size = 0x400, scoped, tag = 'output window, operand 0, single buffered']
    #allocation3 [shape = 's32[1]{0}', space=sflag, size = 0x4, scoped, tag = 'scoped memory for tpu_custom_call.1']
    #allocation4 [shape = 'u8[1024]{0}', space=vmem, size = 0x400, scoped, tag = 'output window, operand 1, single buffered']
    #allocation5 [shape = 's32[1]{0}', space=sflag, size = 0x4, scoped, tag = 'scoped memory for tpu_custom_call.1']
    #allocation6 [shape = 'u8[1024]{0}', space=vmem, size = 0x400, scoped, tag = 'output window, operand 2, single buffered']
    #allocation7 [shape = 'u8[1024]{0}', space=vmem, size = 0x400, scoped, tag = 'output window, operand 3, single buffered']
    #allocation8 [shape = 's32[1]{0}', space=sflag, size = 0x4, scoped, tag = 'scoped memory for tpu_custom_call.1']
    %12 = vsyncpa [#allocation3], 0
    %13 = vsyncpa [#allocation5], 0
    %14 = vsyncpa [#allocation8], 0
    // Predicated region
    $region2: #{tpu_custom_call.1} parent=1 // pred_check
      _
    $region3: #{tpu_custom_call.1} parent=1 // pred_check_branch
      %16 = sbr.rel (0) target = $region5
    $region4: #{tpu_custom_call.1} parent=1 // pred_region
      _
    $region5: #{tpu_custom_call.1} parent=1 // pred_fallthru
      _
    // Predicated region
    $region6: #{tpu_custom_call.1} parent=1 // pred_check
      _
    $region7: #{tpu_custom_call.1} parent=1 // pred_check_branch
      %18 = sbr.rel (0) target = $region9
    $region8: #{tpu_custom_call.1} parent=1 // pred_region
      _
    $region9: #{tpu_custom_call.1} parent=1 // pred_fallthru
      _
    // Predicated region
    $region10: #{tpu_custom_call.1} parent=1 // pred_check
      _
    $region11: #{tpu_custom_call.1} parent=1 // pred_check_branch
      %20 = sbr.rel (0) target = $region13
    $region12: #{tpu_custom_call.1} parent=1 // pred_region
      _
    $region13: #{tpu_custom_call.1} parent=1 // pred_fallthru
      _
    %v21 = vld [vmem:[%s0] sm:$0xff]
    %v22 = vld [vmem:[%s0 + $0x8] sm:$0xff]
    %v23 = vld [vmem:[%s1] sm:$0xff]
    %v24 = vld [vmem:[%s1 + $0x8] sm:$0xff]
    %v25 = vld [vmem:[%s1 + $0x10] sm:$0xff]
    %v26 = vld [vmem:[%s1 + $0x18] sm:$0xff]
    %vm27 = vcmask 261120
    %v29 = vsel %vm27, %v21, 0
    %v32 = vsel %vm27, %v22, 0
    %34 = vmatprep.subr.mxu0 0.0
    %35 = vmatpush1.msra.mxu0 0.0
    %36 = vmatprep.subr.mxu0 0.0
    %37 = vmatpush1.msra.mxu0 0.0
    %38 = vmatprep.subr.mxu0 0.0
    %39 = vmatpush1.msra.mxu0 0.0
    %40 = vmatprep.subr.mxu0 0.0
    %41 = vmatpush1.msra.mxu0 0.0
    %42 = vmatprep.subr.mxu0 0.0
    %43 = vmatpush1.msra.mxu0 0.0
    %44 = vmatprep.subr.mxu0 0.0
    %45 = vmatpush1.msra.mxu0 0.0
    %46 = vmatprep.subr.mxu0 0.0
    %47 = vmatpush1.msra.mxu0 0.0
    %48 = vmatprep.subr.mxu0 0.0
    %49 = vmatpush1.msra.mxu0 0.0
    %50 = vmatprep.subr.mxu0 0.0
    %51 = vmatpush1.msra.mxu0 0.0
    %52 = vmatprep.subr.mxu0 0.0
    %53 = vmatpush1.msra.mxu0 0.0
    %54 = vmatprep.subr.mxu0 0.0
    %55 = vmatpush1.msra.mxu0 0.0
    %56 = vmatprep.subr.mxu0 0.0
    %57 = vmatpush1.msra.mxu0 0.0
    %58 = vmatprep.subr.mxu0 0.0
    %59 = vmatpush1.msra.mxu0 %v26
    %60 = vmatprep.subr.mxu0 0.0
    %61 = vmatpush1.msra.mxu0 %v25
    %62 = vmatprep.subr.mxu0 0.0
    %63 = vmatpush1.msra.mxu0 %v24
    %64 = vmatprep.subr.mxu0 0.0
    %65 = vmatpush1.msra.mxu0 %v23
    %66 = vmatprep.subr.mxu0 0.0
    %67 = vmatpush2.msra.mxu0 0.0
    %68 = vmatprep.subr.mxu0 0.0
    %69 = vmatpush2.msra.mxu0 0.0
    %70 = vmatprep.subr.mxu0 0.0
    %71 = vmatpush2.msra.mxu0 0.0
    %72 = vmatprep.subr.mxu0 0.0
    %73 = vmatpush2.msra.mxu0 0.0
    %74 = vmatprep.subr.mxu0 0.0
    %75 = vmatpush2.msra.mxu0 0.0
    %76 = vmatprep.subr.mxu0 0.0
    %77 = vmatpush2.msra.mxu0 0.0
    %78 = vmatprep.subr.mxu0 0.0
    %79 = vmatpush2.msra.mxu0 0.0
    %80 = vmatprep.subr.mxu0 0.0
    %81 = vmatpush2.msra.mxu0 0.0
    %82 = vmatprep.subr.mxu0 0.0
    %83 = vmatpush2.msra.mxu0 0.0
    %84 = vmatprep.subr.mxu0 0.0
    %85 = vmatpush2.msra.mxu0 0.0
    %86 = vmatprep.subr.mxu0 0.0
    %87 = vmatpush2.msra.mxu0 0.0
    %88 = vmatprep.subr.mxu0 0.0
    %89 = vmatpush2.msra.mxu0 0.0
    %90 = vmatprep.subr.mxu0 0.0
    %91 = vmatpush2.msra.mxu0 0.0
    %92 = vmatprep.subr.mxu0 0.0
    %93 = vmatpush2.msra.mxu0 0.0
    %94 = vmatprep.subr.mxu0 0.0
    %95 = vmatpush2.msra.mxu0 0.0
    %96 = vmatprep.subr.mxu0 0.0
    %97 = vmatpush2.msra.mxu0 0.0
    %98 = vmatprep.mubr.f32.mxu0 0.0
    %99 = vmatmul.mubr.f32.gmra.mxu0 %v29
    %v100 = vpop.f32.mrf.mxu0
    %v101 = vadd.f32 0.0, %v100
    %v102 = vpop.f32.mrf.mxu0
    %103 = vmatprep.mubr.f32.mxu0 0.0
    %104 = vmatmul.mubr.f32.gmra.mxu0 %v32
    %v105 = vpop.f32.mrf.mxu0
    %v106 = vadd.f32 0.0, %v105
    %v107 = vpop.f32.mrf.mxu0
    %108 = vdwg.mxu0
    %vm109 = vcmask 31744
    %v110 = vsel %vm109, %v101, -inf
    %111 = vmax.xlane.f32.xlu0 %v110
    %v112 = vpop.xlane.xlu0 %111
    %v113 = vsel %vm109, %v106, -inf
    %114 = vmax.xlane.f32.xlu0 %v113
    %v115 = vpop.xlane.xlu0 %114
    %v116 = vsub.f32 %v101, %v112
    %v117 = vsub.f32 %v106, %v115
    %v118 = vmul.f32 %v116, 1.442695
    %v119 = vpow.pop %v118
    %v120 = vmul.f32 %v117, 1.442695
    %v121 = vpow.pop %v120
    %v122 = vsel %vm109, %v119, 0.0
    %123 = vadd.xlane.f32.xlu0 %v122
    %v124 = vpop.xlane.xlu0 %123
    %v125 = vsel %vm109, %v121, 0.0
    %126 = vadd.xlane.f32.xlu0 %v125
    %v127 = vpop.xlane.xlu0 %126
    %v128 = vrcp.pop %v124
    %v129 = vmul.f32 %v119, %v128
    %v130 = vrcp.pop %v127
    %v131 = vmul.f32 %v121, %v130
    %v132 = vlaneseq
    %v133 = vand.u32 %v132, 127
    %v134 = vsel %vm109, %v129, -inf
    %135 = vmax.xlane.f32.xlu0 %v134
    %v136 = vpop.xlane.xlu0 %135
    %v137 = vsel %vm109, %v131, -inf
    %138 = vmax.xlane.f32.xlu0 %v137
    %v139 = vpop.xlane.xlu0 %138
    %vm140 = vcmp.eq.f32.partialorder %v129, %v136
    %vm141 = vcmp.eq.f32.partialorder %v131, %v139
    %v142 = vsel %vm140, %v133, 4
    %v143 = vsel %vm141, %v133, 4
    %v144 = vsel %vm109, %v142, 2147483647
    %v145 = vand.u32 %v144, 65535
    %v146 = vshra.s32 %v144, 16
    %v147 = vcvt.s32.f32 %v145
    %v148 = vcvt.s32.f32 %v146
    %149 = vmin.xlane.f32.xlu0 %v148
    %v150 = vpop.xlane.xlu0 %149
    %vm151 = vcmp.eq.f32.partialorder %v148, %v150
    %v152 = vsel %vm151, %v147, inf
    %153 = vmin.xlane.f32.xlu0 %v152
    %v154 = vpop.xlane.xlu0 %153
    %v155 = vcvt.f32.s32 %v154
    %v156 = vcvt.f32.s32 %v150
    %v157 = vshll.u32 %v156, 16
    %v158 = vadd.s32 %v157, %v155
    %v159 = vsel %vm109, %v143, 2147483647
    %v160 = vand.u32 %v159, 65535
    %v161 = vshra.s32 %v159, 16
    %v162 = vcvt.s32.f32 %v160
    %v163 = vcvt.s32.f32 %v161
    %164 = vmin.xlane.f32.xlu0 %v163
    %v165 = vpop.xlane.xlu0 %164
    %vm166 = vcmp.eq.f32.partialorder %v163, %v165
    %v167 = vsel %vm166, %v162, inf
    %168 = vmin.xlane.f32.xlu0 %v167
    %v169 = vpop.xlane.xlu0 %168
    %v170 = vcvt.f32.s32 %v169
    %v171 = vcvt.f32.s32 %v165
    %v172 = vshll.u32 %v171, 16
    %v173 = vadd.s32 %v172, %v170
    %vm174 = vcmp.eq.s32.totalorder %v133, %v158
    %vm175 = vcmp.eq.s32.totalorder %v133, %v173
    %v176 = vsel %vm174, 1, 0
    %v177 = vsel %vm175, 1, 0
    %v178 = vcvt.s32.f32 %v176
    %v179 = vcvt.s32.f32 %v177
    %v180 = vadd.f32 %v178, 0.0
    %v181 = vadd.f32 %v179, 0.0
    %v182 = vsel %vm174, -3.4028235e+38, %v129
    %v183 = vsel %vm175, -3.4028235e+38, %v131
    %v184 = vsel %vm109, %v182, -inf
    %185 = vmax.xlane.f32.xlu0 %v184
    %v186 = vpop.xlane.xlu0 %185
    %v187 = vsel %vm109, %v183, -inf
    %188 = vmax.xlane.f32.xlu0 %v187
    %v189 = vpop.xlane.xlu0 %188
    %vm190 = vcmp.eq.f32.partialorder %v182, %v186
    %vm191 = vcmp.eq.f32.partialorder %v183, %v189
    %v192 = vsel %vm190, %v133, 4
    %v193 = vsel %vm191, %v133, 4
    %v194 = vsel %vm109, %v192, 2147483647
    %v195 = vand.u32 %v194, 65535
    %v196 = vshra.s32 %v194, 16
    %v197 = vcvt.s32.f32 %v195
    %v198 = vcvt.s32.f32 %v196
    %199 = vmin.xlane.f32.xlu0 %v198
    %v200 = vpop.xlane.xlu0 %199
    %vm201 = vcmp.eq.f32.partialorder %v198, %v200
    %v202 = vsel %vm201, %v197, inf
    %203 = vmin.xlane.f32.xlu0 %v202
    %v204 = vpop.xlane.xlu0 %203
    %v205 = vcvt.f32.s32 %v204
    %v206 = vcvt.f32.s32 %v200
    %v207 = vshll.u32 %v206, 16
    %v208 = vadd.s32 %v207, %v205
    %v209 = vsel %vm109, %v193, 2147483647
    %v210 = vand.u32 %v209, 65535
    %v211 = vshra.s32 %v209, 16
    %v212 = vcvt.s32.f32 %v210
    %v213 = vcvt.s32.f32 %v211
    %214 = vmin.xlane.f32.xlu0 %v213
    %v215 = vpop.xlane.xlu0 %214
    %vm216 = vcmp.eq.f32.partialorder %v213, %v215
    %v217 = vsel %vm216, %v212, inf
    %218 = vmin.xlane.f32.xlu0 %v217
    %v219 = vpop.xlane.xlu0 %218
    %v220 = vcvt.f32.s32 %v219
    %v221 = vcvt.f32.s32 %v215
    %v222 = vshll.u32 %v221, 16
    %v223 = vadd.s32 %v222, %v220
    %vm224 = vcmp.eq.s32.totalorder %v133, %v208
    %vm225 = vcmp.eq.s32.totalorder %v133, %v223
    %v226 = vsel %vm224, 1, 0
    %v227 = vsel %vm225, 1, 0
    %v228 = vcvt.s32.f32 %v226
    %v229 = vcvt.s32.f32 %v227
    %v230 = vadd.f32 %v180, %v228
    %v231 = vadd.f32 %v181, %v229
    %vm232 = vcmask 7168
    %v233 = vsel %vm232, %v136, %v186
    %v234 = vsel %vm232, %v139, %v189
    %v235 = vsel %vm232, %v158, %v208
    %v236 = vsel %vm232, %v173, %v223
    %237 = vxpose.xlu0.b32.start [1/16] %v233, 128
    %238 = vxpose.xlu0.b32.cont [2/16] %v234, 128
    %239 = vxpose.xlu0.b32.cont [3/16] 0.0, 128
    %240 = vxpose.xlu0.b32.cont [4/16] 0.0, 128
    %241 = vxpose.xlu0.b32.cont [5/16] 0.0, 128
    %242 = vxpose.xlu0.b32.cont [6/16] 0.0, 128
    %243 = vxpose.xlu0.b32.cont [7/16] 0.0, 128
    %244 = vxpose.xlu0.b32.cont [8/16] 0.0, 128
    %245 = vxpose.xlu0.b32.cont [9/16] 0.0, 128
    %246 = vxpose.xlu0.b32.cont [10/16] 0.0, 128
    %247 = vxpose.xlu0.b32.cont [11/16] 0.0, 128
    %248 = vxpose.xlu0.b32.cont [12/16] 0.0, 128
    %249 = vxpose.xlu0.b32.cont [13/16] 0.0, 128
    %250 = vxpose.xlu0.b32.cont [14/16] 0.0, 128
    %251 = vxpose.xlu0.b32.cont [15/16] 0.0, 128
    %252 = vxpose.xlu0.b32.end [16/16] 0.0, 128
    %v253 = vpop.trf.xlu0
    %v254 = vpop.trf.xlu0
    %v255 = vpop.trf.xlu0
    %v256 = vpop.trf.xlu0
    %v257 = vpop.trf.xlu0
    %v258 = vpop.trf.xlu0
    %v259 = vpop.trf.xlu0
    %v260 = vpop.trf.xlu0
    %v261 = vpop.trf.xlu0
    %v262 = vpop.trf.xlu0
    %v263 = vpop.trf.xlu0
    %v264 = vpop.trf.xlu0
    %v265 = vpop.trf.xlu0
    %v266 = vpop.trf.xlu0
    %v267 = vpop.trf.xlu0
    %v268 = vpop.trf.xlu0
    %vm269 = vcmask 123904
    %270 = vst.msk [vmem:[#allocation2] sm:$0x3] %vm269, %v253
    %271 = vxpose.xlu0.b32.start [1/16] %v235, 128
    %272 = vxpose.xlu0.b32.cont [2/16] %v236, 128
    %273 = vxpose.xlu0.b32.cont [3/16] 0, 128
    %274 = vxpose.xlu0.b32.cont [4/16] 0, 128
    %275 = vxpose.xlu0.b32.cont [5/16] 0, 128
    %276 = vxpose.xlu0.b32.cont [6/16] 0, 128
    %277 = vxpose.xlu0.b32.cont [7/16] 0, 128
    %278 = vxpose.xlu0.b32.cont [8/16] 0, 128
    %279 = vxpose.xlu0.b32.cont [9/16] 0, 128
    %280 = vxpose.xlu0.b32.cont [10/16] 0, 128
    %281 = vxpose.xlu0.b32.cont [11/16] 0, 128
    %282 = vxpose.xlu0.b32.cont [12/16] 0, 128
    %283 = vxpose.xlu0.b32.cont [13/16] 0, 128
    %284 = vxpose.xlu0.b32.cont [14/16] 0, 128
    %285 = vxpose.xlu0.b32.cont [15/16] 0, 128
    %286 = vxpose.xlu0.b32.end [16/16] 0, 128
    %v287 = vpop.trf.xlu0
    %v288 = vpop.trf.xlu0
    %v289 = vpop.trf.xlu0
    %v290 = vpop.trf.xlu0
    %v291 = vpop.trf.xlu0
    %v292 = vpop.trf.xlu0
    %v293 = vpop.trf.xlu0
    %v294 = vpop.trf.xlu0
    %v295 = vpop.trf.xlu0
    %v296 = vpop.trf.xlu0
    %v297 = vpop.trf.xlu0
    %v298 = vpop.trf.xlu0
    %v299 = vpop.trf.xlu0
    %v300 = vpop.trf.xlu0
    %v301 = vpop.trf.xlu0
    %v302 = vpop.trf.xlu0
    %303 = vst.msk [vmem:[#allocation4] sm:$0x3] %vm269, %v287
    %v304 = vld [vmem:[%s2] sm:$0x1]
    %v305 = vlaneseq
    %v306 = vshrl.u32 %v305, 7
    %v307 = vlaneseq
    %v308 = vshrl.u32 %v307, 7
    %v309 = vsub.s32 0, %v308
    %v310 = vrot.slane %v304, %v309
    %vm311 = vcmp.eq.s32.totalorder %v306, %v310
    %v312 = vsel %vm311, 1, 0
    %v313 = vcvt.s32.f32 %v312
    %vm314 = vcmask 130048
    %v316 = vsel %vm314, %v313, 0
    %318 = vmatprep.subr.mxu0 0.0
    %319 = vmatpush1.msra.mxu0 0.0
    %320 = vmatprep.subr.mxu0 0.0
    %321 = vmatpush1.msra.mxu0 0.0
    %322 = vmatprep.subr.mxu0 0.0
    %323 = vmatpush1.msra.mxu0 0.0
    %324 = vmatprep.subr.mxu0 0.0
    %325 = vmatpush1.msra.mxu0 0.0
    %326 = vmatprep.subr.mxu0 0.0
    %327 = vmatpush1.msra.mxu0 0.0
    %328 = vmatprep.subr.mxu0 0.0
    %329 = vmatpush1.msra.mxu0 0.0
    %330 = vmatprep.subr.mxu0 0.0
    %331 = vmatpush1.msra.mxu0 0.0
    %332 = vmatprep.subr.mxu0 0.0
    %333 = vmatpush1.msra.mxu0 0.0
    %334 = vmatprep.subr.mxu0 0.0
    %335 = vmatpush1.msra.mxu0 0.0
    %336 = vmatprep.subr.mxu0 0.0
    %337 = vmatpush1.msra.mxu0 0.0
    %338 = vmatprep.subr.mxu0 0.0
    %339 = vmatpush1.msra.mxu0 0.0
    %340 = vmatprep.subr.mxu0 0.0
    %341 = vmatpush1.msra.mxu0 0.0
    %342 = vmatprep.subr.mxu0 0.0
    %343 = vmatpush1.msra.mxu0 0.0
    %344 = vmatprep.subr.mxu0 0.0
    %345 = vmatpush1.msra.mxu0 0.0
    %346 = vmatprep.subr.mxu0 0.0
    %347 = vmatpush1.msra.mxu0 %v131
    %348 = vmatprep.subr.mxu0 0.0
    %349 = vmatpush1.msra.mxu0 %v129
    %350 = vmatprep.subr.mxu0 0.0
    %351 = vmatpush2.msra.mxu0 0.0
    %352 = vmatprep.subr.mxu0 0.0
    %353 = vmatpush2.msra.mxu0 0.0
    %354 = vmatprep.subr.mxu0 0.0
    %355 = vmatpush2.msra.mxu0 0.0
    %356 = vmatprep.subr.mxu0 0.0
    %357 = vmatpush2.msra.mxu0 0.0
    %358 = vmatprep.subr.mxu0 0.0
    %359 = vmatpush2.msra.mxu0 0.0
    %360 = vmatprep.subr.mxu0 0.0
    %361 = vmatpush2.msra.mxu0 0.0
    %362 = vmatprep.subr.mxu0 0.0
    %363 = vmatpush2.msra.mxu0 0.0
    %364 = vmatprep.subr.mxu0 0.0
    %365 = vmatpush2.msra.mxu0 0.0
    %366 = vmatprep.subr.mxu0 0.0
    %367 = vmatpush2.msra.mxu0 0.0
    %368 = vmatprep.subr.mxu0 0.0
    %369 = vmatpush2.msra.mxu0 0.0
    %370 = vmatprep.subr.mxu0 0.0
    %371 = vmatpush2.msra.mxu0 0.0
    %372 = vmatprep.subr.mxu0 0.0
    %373 = vmatpush2.msra.mxu0 0.0
    %374 = vmatprep.subr.mxu0 0.0
    %375 = vmatpush2.msra.mxu0 0.0
    %376 = vmatprep.subr.mxu0 0.0
    %377 = vmatpush2.msra.mxu0 0.0
    %378 = vmatprep.subr.mxu0 0.0
    %379 = vmatpush2.msra.mxu0 0.0
    %380 = vmatprep.subr.mxu0 0.0
    %381 = vmatpush2.msra.mxu0 0.0
    %382 = vmatprep.mubr.f32.mxu0 0.0
    %383 = vmatmul.mubr.f32.gmra.mxu0 %v316
    %v384 = vpop.f32.mrf.mxu0
    %v385 = vadd.f32 0.0, %v384
    %v386 = vpop.f32.mrf.mxu0
    %387 = vdwg.mxu0
    %vm388 = vcmask 25600
    %389 = vst.msk [vmem:[#allocation6] sm:$0x3] %vm388, %v385
    %390 = vmatprep.subr.mxu0 0.0
    %391 = vmatpush1.msra.mxu0 0.0
    %392 = vmatprep.subr.mxu0 0.0
    %393 = vmatpush1.msra.mxu0 0.0
    %394 = vmatprep.subr.mxu0 0.0
    %395 = vmatpush1.msra.mxu0 0.0
    %396 = vmatprep.subr.mxu0 0.0
    %397 = vmatpush1.msra.mxu0 0.0
    %398 = vmatprep.subr.mxu0 0.0
    %399 = vmatpush1.msra.mxu0 0.0
    %400 = vmatprep.subr.mxu0 0.0
    %401 = vmatpush1.msra.mxu0 0.0
    %402 = vmatprep.subr.mxu0 0.0
    %403 = vmatpush1.msra.mxu0 0.0
    %404 = vmatprep.subr.mxu0 0.0
    %405 = vmatpush1.msra.mxu0 0.0
    %406 = vmatprep.subr.mxu0 0.0
    %407 = vmatpush1.msra.mxu0 0.0
    %408 = vmatprep.subr.mxu0 0.0
    %409 = vmatpush1.msra.mxu0 0.0
    %410 = vmatprep.subr.mxu0 0.0
    %411 = vmatpush1.msra.mxu0 0.0
    %412 = vmatprep.subr.mxu0 0.0
    %413 = vmatpush1.msra.mxu0 0.0
    %414 = vmatprep.subr.mxu0 0.0
    %415 = vmatpush1.msra.mxu0 0.0
    %416 = vmatprep.subr.mxu0 0.0
    %417 = vmatpush1.msra.mxu0 0.0
    %418 = vmatprep.subr.mxu0 0.0
    %419 = vmatpush1.msra.mxu0 %v231
    %420 = vmatprep.subr.mxu0 0.0
    %421 = vmatpush1.msra.mxu0 %v230
    %422 = vmatprep.subr.mxu0 0.0
    %423 = vmatpush2.msra.mxu0 0.0
    %424 = vmatprep.subr.mxu0 0.0
    %425 = vmatpush2.msra.mxu0 0.0
    %426 = vmatprep.subr.mxu0 0.0
    %427 = vmatpush2.msra.mxu0 0.0
    %428 = vmatprep.subr.mxu0 0.0
    %429 = vmatpush2.msra.mxu0 0.0
    %430 = vmatprep.subr.mxu0 0.0
    %431 = vmatpush2.msra.mxu0 0.0
    %432 = vmatprep.subr.mxu0 0.0
    %433 = vmatpush2.msra.mxu0 0.0
    %434 = vmatprep.subr.mxu0 0.0
    %435 = vmatpush2.msra.mxu0 0.0
    %436 = vmatprep.subr.mxu0 0.0
    %437 = vmatpush2.msra.mxu0 0.0
    %438 = vmatprep.subr.mxu0 0.0
    %439 = vmatpush2.msra.mxu0 0.0
    %440 = vmatprep.subr.mxu0 0.0
    %441 = vmatpush2.msra.mxu0 0.0
    %442 = vmatprep.subr.mxu0 0.0
    %443 = vmatpush2.msra.mxu0 0.0
    %444 = vmatprep.subr.mxu0 0.0
    %445 = vmatpush2.msra.mxu0 0.0
    %446 = vmatprep.subr.mxu0 0.0
    %447 = vmatpush2.msra.mxu0 0.0
    %448 = vmatprep.subr.mxu0 0.0
    %449 = vmatpush2.msra.mxu0 0.0
    %450 = vmatprep.subr.mxu0 0.0
    %451 = vmatpush2.msra.mxu0 0.0
    %452 = vmatprep.subr.mxu0 0.0
    %453 = vmatpush2.msra.mxu0 0.0
    %454 = vmatprep.mubr.f32.mxu0 0.0
    %455 = vmatmul.mubr.f32.gmra.mxu0 %v316
    %v456 = vpop.f32.mrf.mxu0
    %v457 = vadd.f32 0.0, %v456
    %v458 = vpop.f32.mrf.mxu0
    %459 = vdwg.mxu0
    %460 = vst.msk [vmem:[#allocation7] sm:$0x3] %vm388, %v457
    // Predicated region
    $region14: #{tpu_custom_call.1} parent=1 // pred_check
      _
    $region15: #{tpu_custom_call.1} parent=1 // pred_check_branch
      %462 = sbr.rel (0) target = $region17
    $region16: #{tpu_custom_call.1} parent=1 // pred_region
      %s464 = ssub.s32 32, 32
      %465 = vsyncadd [#allocation3], %s464
      %s467 = sshll.u32 [#allocation2], 4
      %s468 = int_to_ptr.vmem [resolvable:$true] %s467
      %470 = dma.vmem_to_hbm [thread:$0]  %s468, 32, %s3, [#allocation3]
    $region17: #{tpu_custom_call.1} parent=1 // pred_fallthru
      _
    // Predicated region
    $region18: #{tpu_custom_call.1} parent=1 // pred_check
      _
    $region19: #{tpu_custom_call.1} parent=1 // pred_check_branch
      %472 = sbr.rel (0) target = $region21
    $region20: #{tpu_custom_call.1} parent=1 // pred_region
      %s474 = ssub.s32 32, 32
      %475 = vsyncadd [#allocation5], %s474
      %s477 = sshll.u32 [#allocation4], 4
      %s478 = int_to_ptr.vmem [resolvable:$true] %s477
      %480 = dma.vmem_to_hbm [thread:$0]  %s478, 32, %s4, [#allocation5]
    $region21: #{tpu_custom_call.1} parent=1 // pred_fallthru
      _
    // Predicated region
    $region22: #{tpu_custom_call.1} parent=1 // pred_check
      _
    $region23: #{tpu_custom_call.1} parent=1 // pred_check_branch
      %482 = sbr.rel (0) target = $region25
    $region24: #{tpu_custom_call.1} parent=1 // pred_region
      %s484 = ssub.s32 32, 32
      %485 = vsyncadd [#allocation5], %s484
      %s487 = sshll.u32 [#allocation6], 4
      %s488 = int_to_ptr.vmem [resolvable:$true] %s487
      %490 = dma.vmem_to_hbm [thread:$0]  %s488, 32, %s5, [#allocation5]
    $region25: #{tpu_custom_call.1} parent=1 // pred_fallthru
      _
    // Predicated region
    $region26: #{tpu_custom_call.1} parent=1 // pred_check
      _
    $region27: #{tpu_custom_call.1} parent=1 // pred_check_branch
      %492 = sbr.rel (0) target = $region29
    $region28: #{tpu_custom_call.1} parent=1 // pred_region
      %s494 = ssub.s32 32, 32
      %495 = vsyncadd [#allocation8], %s494
      %s497 = sshll.u32 [#allocation7], 4
      %s498 = int_to_ptr.vmem [resolvable:$true] %s497
      %500 = dma.vmem_to_hbm [thread:$0]  %s498, 32, %s6, [#allocation8]
    $region29: #{tpu_custom_call.1} parent=1 // pred_fallthru
      _
    // Predicated region
    $region30: #{tpu_custom_call.1} parent=1 // pred_check
      _
    $region31: #{tpu_custom_call.1} parent=1 // pred_check_branch
      %502 = sbr.rel (0) target = $region33
    $region32: #{tpu_custom_call.1} parent=1 // pred_region
      %503 = dma.done [#allocation3], 32
    $region33: #{tpu_custom_call.1} parent=1 // pred_fallthru
      _
    // Predicated region
    $region34: #{tpu_custom_call.1} parent=1 // pred_check
      _
    $region35: #{tpu_custom_call.1} parent=1 // pred_check_branch
      %505 = sbr.rel (0) target = $region37
    $region36: #{tpu_custom_call.1} parent=1 // pred_region
      %506 = dma.done [#allocation5], 32
    $region37: #{tpu_custom_call.1} parent=1 // pred_fallthru
      _
    // Predicated region
    $region38: #{tpu_custom_call.1} parent=1 // pred_check
      _
    $region39: #{tpu_custom_call.1} parent=1 // pred_check_branch
      %508 = sbr.rel (0) target = $region41
    $region40: #{tpu_custom_call.1} parent=1 // pred_region
      %509 = dma.done [#allocation5], 32
    $region41: #{tpu_custom_call.1} parent=1 // pred_fallthru
      _
    // Predicated region
    $region42: #{tpu_custom_call.1} parent=1 // pred_check
      _
    $region43: #{tpu_custom_call.1} parent=1 // pred_check_branch
      %511 = sbr.rel (0) target = $region45
    $region44: #{tpu_custom_call.1} parent=1 // pred_region
      %512 = dma.done [#allocation8], 32
    $region45: #{tpu_custom_call.1} parent=1 // pred_fallthru
      _
    %513 = vsyncpa [#allocation3], 1
    %514 = vsyncpa [#allocation5], 1
    %515 = vsyncpa [#allocation8], 1

// kernel: tpu_custom_call.1
$region0: #{tpu_custom_call.1}
  #allocation0 [shape = 'u32[]', space=smem, size = 0x4, offset = 0x4, fixed_abs, tag = 'smem constant byte address 0x4 - core index']
  #allocation1 [shape = 'u32[144,128]{1,0:T(1,128)}', space=vmem, size = 0x12000, scoped, tag = 'internal scratch']
  %s0 = inlined_call_operand.vmem [shape: f32[16,32], index: 0, kind: input, shape index: {}]
  %s1 = inlined_call_operand.vmem [shape: f32[32,4], index: 1, kind: input, shape index: {}]
  %s2 = inlined_call_operand.vmem [shape: s32[1,1,16], index: 2, kind: input, shape index: {}]
  %s3 = inlined_call_operand.vmem [shape: f32[16,2], index: 3, kind: output, shape index: {0}]
  %s4 = inlined_call_operand.vmem [shape: s32[16,2], index: 4, kind: output, shape index: {1}]
  %s5 = inlined_call_operand.hbm [shape: f32[1,2,4], index: 5, kind: output, shape index: {2}]
  %s6 = inlined_call_operand.hbm [shape: f32[1,2,4], index: 6, kind: output, shape index: {3}]
  %7 = xla_tuple %s3, %s4, %s5, %s6
  %s8 = sld [smem:[#allocation0]]
  $region46: #{tpu_custom_call.1} parent=0
    _
  %s10 = ssub.s32 1, %s8
  %s11 = scalar_select 0, %s10, %s8
  $region1: #{tpu_custom_call.1} parent=0
    #allocation2 [shape = 'u8[1024]{0}', space=vmem, size = 0x400, scoped, tag = 'output window, operand 2, single buffered']
    #allocation3 [shape = 's32[1]{0}', space=sflag, size = 0x4, scoped, tag = 'scoped memory for tpu_custom_call.1']
    #allocation4 [shape = 'u8[1024]{0}', space=vmem, size = 0x400, scoped, tag = 'output window, operand 3, single buffered']
    #allocation5 [shape = 's32[1]{0}', space=sflag, size = 0x4, scoped, tag = 'scoped memory for tpu_custom_call.1']
    %12 = vsyncpa [#allocation3], 0
    %13 = vsyncpa [#allocation5], 0
    // Predicated region
    $region2: #{tpu_custom_call.1} parent=1 // pred_check
      _
    $region3: #{tpu_custom_call.1} parent=1 // pred_check_branch
      %15 = sbr.rel (0) target = $region5
    $region4: #{tpu_custom_call.1} parent=1 // pred_region
      _
    $region5: #{tpu_custom_call.1} parent=1 // pred_fallthru
      _
    // Predicated region
    $region6: #{tpu_custom_call.1} parent=1 // pred_check
      _
    $region7: #{tpu_custom_call.1} parent=1 // pred_check_branch
      %17 = sbr.rel (0) target = $region9
    $region8: #{tpu_custom_call.1} parent=1 // pred_region
      _
    $region9: #{tpu_custom_call.1} parent=1 // pred_fallthru
      _
    // Predicated region
    $region10: #{tpu_custom_call.1} parent=1 // pred_check
      _
    $region11: #{tpu_custom_call.1} parent=1 // pred_check_branch
      %19 = sbr.rel (0) target = $region13
    $region12: #{tpu_custom_call.1} parent=1 // pred_region
      _
    $region13: #{tpu_custom_call.1} parent=1 // pred_fallthru
      _
    %v20 = vld [vmem:[%s0] sm:$0xff]
    %v21 = vld [vmem:[%s0 + $0x8] sm:$0xff]
    %v22 = vld [vmem:[%s1] sm:$0xff]
    %v23 = vld [vmem:[%s1 + $0x8] sm:$0xff]
    %v24 = vld [vmem:[%s1 + $0x10] sm:$0xff]
    %v25 = vld [vmem:[%s1 + $0x18] sm:$0xff]
    %vm26 = vcmask 261120
    %v28 = vsel %vm26, %v20, 0
    %v31 = vsel %vm26, %v21, 0
    %33 = vmatprep.subr.mxu0 0.0
    %34 = vmatpush1.msra.mxu0 0.0
    %35 = vmatprep.subr.mxu0 0.0
    %36 = vmatpush1.msra.mxu0 0.0
    %37 = vmatprep.subr.mxu0 0.0
    %38 = vmatpush1.msra.mxu0 0.0
    %39 = vmatprep.subr.mxu0 0.0
    %40 = vmatpush1.msra.mxu0 0.0
    %41 = vmatprep.subr.mxu0 0.0
    %42 = vmatpush1.msra.mxu0 0.0
    %43 = vmatprep.subr.mxu0 0.0
    %44 = vmatpush1.msra.mxu0 0.0
    %45 = vmatprep.subr.mxu0 0.0
    %46 = vmatpush1.msra.mxu0 0.0
    %47 = vmatprep.subr.mxu0 0.0
    %48 = vmatpush1.msra.mxu0 0.0
    %49 = vmatprep.subr.mxu0 0.0
    %50 = vmatpush1.msra.mxu0 0.0
    %51 = vmatprep.subr.mxu0 0.0
    %52 = vmatpush1.msra.mxu0 0.0
    %53 = vmatprep.subr.mxu0 0.0
    %54 = vmatpush1.msra.mxu0 0.0
    %55 = vmatprep.subr.mxu0 0.0
    %56 = vmatpush1.msra.mxu0 0.0
    %57 = vmatprep.subr.mxu0 0.0
    %58 = vmatpush1.msra.mxu0 %v25
    %59 = vmatprep.subr.mxu0 0.0
    %60 = vmatpush1.msra.mxu0 %v24
    %61 = vmatprep.subr.mxu0 0.0
    %62 = vmatpush1.msra.mxu0 %v23
    %63 = vmatprep.subr.mxu0 0.0
    %64 = vmatpush1.msra.mxu0 %v22
    %65 = vmatprep.subr.mxu0 0.0
    %66 = vmatpush2.msra.mxu0 0.0
    %67 = vmatprep.subr.mxu0 0.0
    %68 = vmatpush2.msra.mxu0 0.0
    %69 = vmatprep.subr.mxu0 0.0
    %70 = vmatpush2.msra.mxu0 0.0
    %71 = vmatprep.subr.mxu0 0.0
    %72 = vmatpush2.msra.mxu0 0.0
    %73 = vmatprep.subr.mxu0 0.0
    %74 = vmatpush2.msra.mxu0 0.0
    %75 = vmatprep.subr.mxu0 0.0
    %76 = vmatpush2.msra.mxu0 0.0
    %77 = vmatprep.subr.mxu0 0.0
    %78 = vmatpush2.msra.mxu0 0.0
    %79 = vmatprep.subr.mxu0 0.0
    %80 = vmatpush2.msra.mxu0 0.0
    %81 = vmatprep.subr.mxu0 0.0
    %82 = vmatpush2.msra.mxu0 0.0
    %83 = vmatprep.subr.mxu0 0.0
    %84 = vmatpush2.msra.mxu0 0.0
    %85 = vmatprep.subr.mxu0 0.0
    %86 = vmatpush2.msra.mxu0 0.0
    %87 = vmatprep.subr.mxu0 0.0
    %88 = vmatpush2.msra.mxu0 0.0
    %89 = vmatprep.subr.mxu0 0.0
    %90 = vmatpush2.msra.mxu0 0.0
    %91 = vmatprep.subr.mxu0 0.0
    %92 = vmatpush2.msra.mxu0 0.0
    %93 = vmatprep.subr.mxu0 0.0
    %94 = vmatpush2.msra.mxu0 0.0
    %95 = vmatprep.subr.mxu0 0.0
    %96 = vmatpush2.msra.mxu0 0.0
    %97 = vmatprep.mubr.f32.mxu0 0.0
    %98 = vmatmul.mubr.f32.gmra.mxu0 %v28
    %v99 = vpop.f32.mrf.mxu0
    %v100 = vadd.f32 0.0, %v99
    %v101 = vpop.f32.mrf.mxu0
    %102 = vmatprep.mubr.f32.mxu0 0.0
    %103 = vmatmul.mubr.f32.gmra.mxu0 %v31
    %v104 = vpop.f32.mrf.mxu0
    %v105 = vadd.f32 0.0, %v104
    %v106 = vpop.f32.mrf.mxu0
    %107 = vdwg.mxu0
    %vm108 = vcmask 31744
    %v109 = vsel %vm108, %v100, -inf
    %110 = vmax.xlane.f32.xlu0 %v109
    %v111 = vpop.xlane.xlu0 %110
    %v112 = vsel %vm108, %v105, -inf
    %113 = vmax.xlane.f32.xlu0 %v112
    %v114 = vpop.xlane.xlu0 %113
    %v115 = vsub.f32 %v100, %v111
    %v116 = vsub.f32 %v105, %v114
    %v117 = vmul.f32 %v115, 1.442695
    %v118 = vpow.pop %v117
    %v119 = vmul.f32 %v116, 1.442695
    %v120 = vpow.pop %v119
    %v121 = vsel %vm108, %v118, 0.0
    %122 = vadd.xlane.f32.xlu0 %v121
    %v123 = vpop.xlane.xlu0 %122
    %v124 = vsel %vm108, %v120, 0.0
    %125 = vadd.xlane.f32.xlu0 %v124
    %v126 = vpop.xlane.xlu0 %125
    %v127 = vrcp.pop %v123
    %v128 = vmul.f32 %v118, %v127
    %v129 = vrcp.pop %v126
    %v130 = vmul.f32 %v120, %v129
    %v131 = vlaneseq
    %v132 = vand.u32 %v131, 127
    %v133 = vsel %vm108, %v128, -inf
    %134 = vmax.xlane.f32.xlu0 %v133
    %v135 = vpop.xlane.xlu0 %134
    %v136 = vsel %vm108, %v130, -inf
    %137 = vmax.xlane.f32.xlu0 %v136
    %v138 = vpop.xlane.xlu0 %137
    %vm139 = vcmp.eq.f32.partialorder %v128, %v135
    %vm140 = vcmp.eq.f32.partialorder %v130, %v138
    %v141 = vsel %vm139, %v132, 4
    %v142 = vsel %vm140, %v132, 4
    %v143 = vsel %vm108, %v141, 2147483647
    %v144 = vand.u32 %v143, 65535
    %v145 = vshra.s32 %v143, 16
    %v146 = vcvt.s32.f32 %v144
    %v147 = vcvt.s32.f32 %v145
    %148 = vmin.xlane.f32.xlu0 %v147
    %v149 = vpop.xlane.xlu0 %148
    %vm150 = vcmp.eq.f32.partialorder %v147, %v149
    %v151 = vsel %vm150, %v146, inf
    %152 = vmin.xlane.f32.xlu0 %v151
    %v153 = vpop.xlane.xlu0 %152
    %v154 = vcvt.f32.s32 %v153
    %v155 = vcvt.f32.s32 %v149
    %v156 = vshll.u32 %v155, 16
    %v157 = vadd.s32 %v156, %v154
    %v158 = vsel %vm108, %v142, 2147483647
    %v159 = vand.u32 %v158, 65535
    %v160 = vshra.s32 %v158, 16
    %v161 = vcvt.s32.f32 %v159
    %v162 = vcvt.s32.f32 %v160
    %163 = vmin.xlane.f32.xlu0 %v162
    %v164 = vpop.xlane.xlu0 %163
    %vm165 = vcmp.eq.f32.partialorder %v162, %v164
    %v166 = vsel %vm165, %v161, inf
    %167 = vmin.xlane.f32.xlu0 %v166
    %v168 = vpop.xlane.xlu0 %167
    %v169 = vcvt.f32.s32 %v168
    %v170 = vcvt.f32.s32 %v164
    %v171 = vshll.u32 %v170, 16
    %v172 = vadd.s32 %v171, %v169
    %vm173 = vcmp.eq.s32.totalorder %v132, %v157
    %vm174 = vcmp.eq.s32.totalorder %v132, %v172
    %v175 = vsel %vm173, 1, 0
    %v176 = vsel %vm174, 1, 0
    %v177 = vcvt.s32.f32 %v175
    %v178 = vcvt.s32.f32 %v176
    %v179 = vadd.f32 %v177, 0.0
    %v180 = vadd.f32 %v178, 0.0
    %v181 = vsel %vm173, -3.4028235e+38, %v128
    %v182 = vsel %vm174, -3.4028235e+38, %v130
    %v183 = vsel %vm108, %v181, -inf
    %184 = vmax.xlane.f32.xlu0 %v183
    %v185 = vpop.xlane.xlu0 %184
    %v186 = vsel %vm108, %v182, -inf
    %187 = vmax.xlane.f32.xlu0 %v186
    %v188 = vpop.xlane.xlu0 %187
    %vm189 = vcmp.eq.f32.partialorder %v181, %v185
    %vm190 = vcmp.eq.f32.partialorder %v182, %v188
    %v191 = vsel %vm189, %v132, 4
    %v192 = vsel %vm190, %v132, 4
    %v193 = vsel %vm108, %v191, 2147483647
    %v194 = vand.u32 %v193, 65535
    %v195 = vshra.s32 %v193, 16
    %v196 = vcvt.s32.f32 %v194
    %v197 = vcvt.s32.f32 %v195
    %198 = vmin.xlane.f32.xlu0 %v197
    %v199 = vpop.xlane.xlu0 %198
    %vm200 = vcmp.eq.f32.partialorder %v197, %v199
    %v201 = vsel %vm200, %v196, inf
    %202 = vmin.xlane.f32.xlu0 %v201
    %v203 = vpop.xlane.xlu0 %202
    %v204 = vcvt.f32.s32 %v203
    %v205 = vcvt.f32.s32 %v199
    %v206 = vshll.u32 %v205, 16
    %v207 = vadd.s32 %v206, %v204
    %v208 = vsel %vm108, %v192, 2147483647
    %v209 = vand.u32 %v208, 65535
    %v210 = vshra.s32 %v208, 16
    %v211 = vcvt.s32.f32 %v209
    %v212 = vcvt.s32.f32 %v210
    %213 = vmin.xlane.f32.xlu0 %v212
    %v214 = vpop.xlane.xlu0 %213
    %vm215 = vcmp.eq.f32.partialorder %v212, %v214
    %v216 = vsel %vm215, %v211, inf
    %217 = vmin.xlane.f32.xlu0 %v216
    %v218 = vpop.xlane.xlu0 %217
    %v219 = vcvt.f32.s32 %v218
    %v220 = vcvt.f32.s32 %v214
    %v221 = vshll.u32 %v220, 16
    %v222 = vadd.s32 %v221, %v219
    %vm223 = vcmp.eq.s32.totalorder %v132, %v207
    %vm224 = vcmp.eq.s32.totalorder %v132, %v222
    %v225 = vsel %vm223, 1, 0
    %v226 = vsel %vm224, 1, 0
    %v227 = vcvt.s32.f32 %v225
    %v228 = vcvt.s32.f32 %v226
    %v229 = vadd.f32 %v179, %v227
    %v230 = vadd.f32 %v180, %v228
    %vm231 = vcmask 7168
    %v232 = vsel %vm231, %v135, %v185
    %v233 = vsel %vm231, %v138, %v188
    %v234 = vsel %vm231, %v157, %v207
    %v235 = vsel %vm231, %v172, %v222
    %vm236 = vcmask 15360
    %237 = vst.msk [vmem:[%s3] sm:$0xff] %vm236, %v232
    %238 = vst.msk [vmem:[%s3 + $0x8] sm:$0xff] %vm236, %v233
    %239 = vst.msk [vmem:[%s4] sm:$0xff] %vm236, %v234
    %240 = vst.msk [vmem:[%s4 + $0x8] sm:$0xff] %vm236, %v235
    %v241 = vld [vmem:[%s2] sm:$0x1]
    %v242 = vlaneseq
    %v243 = vshrl.u32 %v242, 7
    %v244 = vlaneseq
    %v245 = vshrl.u32 %v244, 7
    %v246 = vsub.s32 0, %v245
    %v247 = vrot.slane %v241, %v246
    %vm248 = vcmp.eq.s32.totalorder %v243, %v247
    %v249 = vsel %vm248, 1, 0
    %v250 = vcvt.s32.f32 %v249
    %vm251 = vcmask 130048
    %v253 = vsel %vm251, %v250, 0
    %255 = vmatprep.subr.mxu0 0.0
    %256 = vmatpush1.msra.mxu0 0.0
    %257 = vmatprep.subr.mxu0 0.0
    %258 = vmatpush1.msra.mxu0 0.0
    %259 = vmatprep.subr.mxu0 0.0
    %260 = vmatpush1.msra.mxu0 0.0
    %261 = vmatprep.subr.mxu0 0.0
    %262 = vmatpush1.msra.mxu0 0.0
    %263 = vmatprep.subr.mxu0 0.0
    %264 = vmatpush1.msra.mxu0 0.0
    %265 = vmatprep.subr.mxu0 0.0
    %266 = vmatpush1.msra.mxu0 0.0
    %267 = vmatprep.subr.mxu0 0.0
    %268 = vmatpush1.msra.mxu0 0.0
    %269 = vmatprep.subr.mxu0 0.0
    %270 = vmatpush1.msra.mxu0 0.0
    %271 = vmatprep.subr.mxu0 0.0
    %272 = vmatpush1.msra.mxu0 0.0
    %273 = vmatprep.subr.mxu0 0.0
    %274 = vmatpush1.msra.mxu0 0.0
    %275 = vmatprep.subr.mxu0 0.0
    %276 = vmatpush1.msra.mxu0 0.0
    %277 = vmatprep.subr.mxu0 0.0
    %278 = vmatpush1.msra.mxu0 0.0
    %279 = vmatprep.subr.mxu0 0.0
    %280 = vmatpush1.msra.mxu0 0.0
    %281 = vmatprep.subr.mxu0 0.0
    %282 = vmatpush1.msra.mxu0 0.0
    %283 = vmatprep.subr.mxu0 0.0
    %284 = vmatpush1.msra.mxu0 %v130
    %285 = vmatprep.subr.mxu0 0.0
    %286 = vmatpush1.msra.mxu0 %v128
    %287 = vmatprep.subr.mxu0 0.0
    %288 = vmatpush2.msra.mxu0 0.0
    %289 = vmatprep.subr.mxu0 0.0
    %290 = vmatpush2.msra.mxu0 0.0
    %291 = vmatprep.subr.mxu0 0.0
    %292 = vmatpush2.msra.mxu0 0.0
    %293 = vmatprep.subr.mxu0 0.0
    %294 = vmatpush2.msra.mxu0 0.0
    %295 = vmatprep.subr.mxu0 0.0
    %296 = vmatpush2.msra.mxu0 0.0
    %297 = vmatprep.subr.mxu0 0.0
    %298 = vmatpush2.msra.mxu0 0.0
    %299 = vmatprep.subr.mxu0 0.0
    %300 = vmatpush2.msra.mxu0 0.0
    %301 = vmatprep.subr.mxu0 0.0
    %302 = vmatpush2.msra.mxu0 0.0
    %303 = vmatprep.subr.mxu0 0.0
    %304 = vmatpush2.msra.mxu0 0.0
    %305 = vmatprep.subr.mxu0 0.0
    %306 = vmatpush2.msra.mxu0 0.0
    %307 = vmatprep.subr.mxu0 0.0
    %308 = vmatpush2.msra.mxu0 0.0
    %309 = vmatprep.subr.mxu0 0.0
    %310 = vmatpush2.msra.mxu0 0.0
    %311 = vmatprep.subr.mxu0 0.0
    %312 = vmatpush2.msra.mxu0 0.0
    %313 = vmatprep.subr.mxu0 0.0
    %314 = vmatpush2.msra.mxu0 0.0
    %315 = vmatprep.subr.mxu0 0.0
    %316 = vmatpush2.msra.mxu0 0.0
    %317 = vmatprep.subr.mxu0 0.0
    %318 = vmatpush2.msra.mxu0 0.0
    %319 = vmatprep.mubr.f32.mxu0 0.0
    %320 = vmatmul.mubr.f32.gmra.mxu0 %v253
    %v321 = vpop.f32.mrf.mxu0
    %v322 = vadd.f32 0.0, %v321
    %v323 = vpop.f32.mrf.mxu0
    %324 = vdwg.mxu0
    %vm325 = vcmask 25600
    %326 = vst.msk [vmem:[#allocation2] sm:$0x3] %vm325, %v322
    %327 = vmatprep.subr.mxu0 0.0
    %328 = vmatpush1.msra.mxu0 0.0
    %329 = vmatprep.subr.mxu0 0.0
    %330 = vmatpush1.msra.mxu0 0.0
    %331 = vmatprep.subr.mxu0 0.0
    %332 = vmatpush1.msra.mxu0 0.0
    %333 = vmatprep.subr.mxu0 0.0
    %334 = vmatpush1.msra.mxu0 0.0
    %335 = vmatprep.subr.mxu0 0.0
    %336 = vmatpush1.msra.mxu0 0.0
    %337 = vmatprep.subr.mxu0 0.0
    %338 = vmatpush1.msra.mxu0 0.0
    %339 = vmatprep.subr.mxu0 0.0
    %340 = vmatpush1.msra.mxu0 0.0
    %341 = vmatprep.subr.mxu0 0.0
    %342 = vmatpush1.msra.mxu0 0.0
    %343 = vmatprep.subr.mxu0 0.0
    %344 = vmatpush1.msra.mxu0 0.0
    %345 = vmatprep.subr.mxu0 0.0
    %346 = vmatpush1.msra.mxu0 0.0
    %347 = vmatprep.subr.mxu0 0.0
    %348 = vmatpush1.msra.mxu0 0.0
    %349 = vmatprep.subr.mxu0 0.0
    %350 = vmatpush1.msra.mxu0 0.0
    %351 = vmatprep.subr.mxu0 0.0
    %352 = vmatpush1.msra.mxu0 0.0
    %353 = vmatprep.subr.mxu0 0.0
    %354 = vmatpush1.msra.mxu0 0.0
    %355 = vmatprep.subr.mxu0 0.0
    %356 = vmatpush1.msra.mxu0 %v230
    %357 = vmatprep.subr.mxu0 0.0
    %358 = vmatpush1.msra.mxu0 %v229
    %359 = vmatprep.subr.mxu0 0.0
    %360 = vmatpush2.msra.mxu0 0.0
    %361 = vmatprep.subr.mxu0 0.0
    %362 = vmatpush2.msra.mxu0 0.0
    %363 = vmatprep.subr.mxu0 0.0
    %364 = vmatpush2.msra.mxu0 0.0
    %365 = vmatprep.subr.mxu0 0.0
    %366 = vmatpush2.msra.mxu0 0.0
    %367 = vmatprep.subr.mxu0 0.0
    %368 = vmatpush2.msra.mxu0 0.0
    %369 = vmatprep.subr.mxu0 0.0
    %370 = vmatpush2.msra.mxu0 0.0
    %371 = vmatprep.subr.mxu0 0.0
    %372 = vmatpush2.msra.mxu0 0.0
    %373 = vmatprep.subr.mxu0 0.0
    %374 = vmatpush2.msra.mxu0 0.0
    %375 = vmatprep.subr.mxu0 0.0
    %376 = vmatpush2.msra.mxu0 0.0
    %377 = vmatprep.subr.mxu0 0.0
    %378 = vmatpush2.msra.mxu0 0.0
    %379 = vmatprep.subr.mxu0 0.0
    %380 = vmatpush2.msra.mxu0 0.0
    %381 = vmatprep.subr.mxu0 0.0
    %382 = vmatpush2.msra.mxu0 0.0
    %383 = vmatprep.subr.mxu0 0.0
    %384 = vmatpush2.msra.mxu0 0.0
    %385 = vmatprep.subr.mxu0 0.0
    %386 = vmatpush2.msra.mxu0 0.0
    %387 = vmatprep.subr.mxu0 0.0
    %388 = vmatpush2.msra.mxu0 0.0
    %389 = vmatprep.subr.mxu0 0.0
    %390 = vmatpush2.msra.mxu0 0.0
    %391 = vmatprep.mubr.f32.mxu0 0.0
    %392 = vmatmul.mubr.f32.gmra.mxu0 %v253
    %v393 = vpop.f32.mrf.mxu0
    %v394 = vadd.f32 0.0, %v393
    %v395 = vpop.f32.mrf.mxu0
    %396 = vdwg.mxu0
    %397 = vst.msk [vmem:[#allocation4] sm:$0x3] %vm325, %v394
    // Predicated region
    $region14: #{tpu_custom_call.1} parent=1 // pred_check
      _
    $region15: #{tpu_custom_call.1} parent=1 // pred_check_branch
      %399 = sbr.rel (0) target = $region17
    $region16: #{tpu_custom_call.1} parent=1 // pred_region
      _
    $region17: #{tpu_custom_call.1} parent=1 // pred_fallthru
      _
    // Predicated region
    $region18: #{tpu_custom_call.1} parent=1 // pred_check
      _
    $region19: #{tpu_custom_call.1} parent=1 // pred_check_branch
      %401 = sbr.rel (0) target = $region21
    $region20: #{tpu_custom_call.1} parent=1 // pred_region
      _
    $region21: #{tpu_custom_call.1} parent=1 // pred_fallthru
      _
    // Predicated region
    $region22: #{tpu_custom_call.1} parent=1 // pred_check
      _
    $region23: #{tpu_custom_call.1} parent=1 // pred_check_branch
      %403 = sbr.rel (0) target = $region25
    $region24: #{tpu_custom_call.1} parent=1 // pred_region
      %s405 = ssub.s32 32, 32
      %406 = vsyncadd [#allocation3], %s405
      %s408 = sshll.u32 [#allocation2], 4
      %s409 = int_to_ptr.vmem [resolvable:$true] %s408
      %411 = dma.vmem_to_hbm [thread:$0]  %s409, 32, %s5, [#allocation3]
    $region25: #{tpu_custom_call.1} parent=1 // pred_fallthru
      _
    // Predicated region
    $region26: #{tpu_custom_call.1} parent=1 // pred_check
      _
    $region27: #{tpu_custom_call.1} parent=1 // pred_check_branch
      %413 = sbr.rel (0) target = $region29
    $region28: #{tpu_custom_call.1} parent=1 // pred_region
      %s415 = ssub.s32 32, 32
      %416 = vsyncadd [#allocation5], %s415
      %s418 = sshll.u32 [#allocation4], 4
      %s419 = int_to_ptr.vmem [resolvable:$true] %s418
      %421 = dma.vmem_to_hbm [thread:$0]  %s419, 32, %s6, [#allocation5]
    $region29: #{tpu_custom_call.1} parent=1 // pred_fallthru
      _
    // Predicated region
    $region30: #{tpu_custom_call.1} parent=1 // pred_check
      _
    $region31: #{tpu_custom_call.1} parent=1 // pred_check_branch
      %423 = sbr.rel (0) target = $region33
    $region32: #{tpu_custom_call.1} parent=1 // pred_region
      _
    $region33: #{tpu_custom_call.1} parent=1 // pred_fallthru
      _
    // Predicated region
    $region34: #{tpu_custom_call.1} parent=1 // pred_check
      _
    $region35: #{tpu_custom_call.1} parent=1 // pred_check_branch
      %425 = sbr.rel (0) target = $region37
    $region36: #{tpu_custom_call.1} parent=1 // pred_region
      _
    $region37: #{tpu_custom_call.1} parent=1 // pred_fallthru
      _
    // Predicated region
    $region38: #{tpu_custom_call.1} parent=1 // pred_check
      _
    $region39: #{tpu_custom_call.1} parent=1 // pred_check_branch
      %427 = sbr.rel (0) target = $region41
    $region40: #{tpu_custom_call.1} parent=1 // pred_region
      %428 = dma.done [#allocation3], 32
    $region41: #{tpu_custom_call.1} parent=1 // pred_fallthru
      _
    // Predicated region
    $region42: #{tpu_custom_call.1} parent=1 // pred_check
      _
    $region43: #{tpu_custom_call.1} parent=1 // pred_check_branch
      %430 = sbr.rel (0) target = $region45
    $region44: #{tpu_custom_call.1} parent=1 // pred_region
      %431 = dma.done [#allocation5], 32
    $region45: #{tpu_custom_call.1} parent=1 // pred_fallthru
      _
    %432 = vsyncpa [#allocation3], 1
    %433 = vsyncpa [#allocation5], 1

</llo_original>
